<compile_context>
chip_gen: v5e
topology: v5e:2x2
jax: 0.10.0
libtpu: 0.0.40
codegen_flags: <defaults>
</compile_context>

<pallas_src>
import functools

import jax
import jax.numpy as jnp
from jax.experimental import pallas as pl
from jax.experimental.pallas import tpu as pltpu


def _round_up(x: int, m: int) -> int:
    return ((x + m - 1) // m) * m


def _dense_bias_kernel(x_ref, w_ref, b_ref, o_ref):
    # x_ref: (tm, K) compute dtype; w_ref: (K, Np) compute dtype;
    # b_ref: (1, Np) f32; o_ref: (tm, Np) output dtype.
    acc = jnp.dot(x_ref[...], w_ref[...], preferred_element_type=jnp.float32)
    acc = acc + b_ref[...]
    o_ref[...] = acc.astype(o_ref.dtype)


@functools.partial(jax.jit, static_argnames=("tm", "compute_dtype"))
def dinat_output_forward(hidden_states, w_t, bias, *, tm=1024,
                         compute_dtype=jnp.bfloat16):
    """DinatOutput forward: y = x @ w_t + bias  (dropout is identity in eval).

    hidden_states: (B, H, W, C_in) channels-last DiNAT hidden states.
    w_t:           (C_in, C_out)   transposed nn.Linear weight.
    bias:          (C_out,)
    """
    B, H, W, C_in = hidden_states.shape
    C_out = w_t.shape[1]
    out_dtype = hidden_states.dtype
    M = B * H * W

    # Lane-dense output: pad C_out up to a multiple of 128 (vst, not vst.msk).
    C_out_pad = _round_up(C_out, 128)

    # Pick a row tile that keeps the double-buffered footprint well under the
    # smallest scoped-VMEM budget across v5e/v6e/v7x.
    bytes_c = jnp.dtype(compute_dtype).itemsize
    bytes_o = jnp.dtype(out_dtype).itemsize
    vmem_budget = 26 * 1024 * 1024
    fixed = 2 * C_in * C_out_pad * bytes_c + 2 * C_out_pad * 4   # weight + bias
    per_row = 2 * C_in * bytes_c + 2 * C_out_pad * bytes_o       # x + out tiles
    tm_fit = max(256, ((vmem_budget - fixed) // max(per_row, 1)) // 256 * 256)
    tm_eff = max(256, min(tm, tm_fit, _round_up(M, 256)))

    M_pad = _round_up(M, tm_eff)           # no dropped tail rows
    grid = (M_pad // tm_eff,)

    # Prepare padded / cast operands.
    x2d = hidden_states.reshape(M, C_in).astype(compute_dtype)
    if M_pad != M:
        x2d = jnp.pad(x2d, ((0, M_pad - M), (0, 0)))

    w_p = w_t.astype(compute_dtype)
    b_p = bias.astype(jnp.float32)
    if C_out_pad != C_out:
        w_p = jnp.pad(w_p, ((0, 0), (0, C_out_pad - C_out)))
        b_p = jnp.pad(b_p, ((0, C_out_pad - C_out),))
    b2d = b_p.reshape(1, C_out_pad)

    cost = pl.CostEstimate(
        flops=2 * M_pad * C_in * C_out_pad,
        transcendentals=0,
        bytes_accessed=(M_pad * C_in * bytes_c
                        + C_in * C_out_pad * bytes_c
                        + C_out_pad * 4
                        + M_pad * C_out_pad * bytes_o),
    )

    out2d = pl.pallas_call(
        _dense_bias_kernel,
        out_shape=jax.ShapeDtypeStruct((M_pad, C_out_pad), out_dtype),
        grid_spec=pltpu.PrefetchScalarGridSpec(
            num_scalar_prefetch=0,
            grid=grid,
            in_specs=[
                pl.BlockSpec((tm_eff, C_in), lambda i: (i, 0)),
                pl.BlockSpec((C_in, C_out_pad), lambda i: (0, 0)),
                pl.BlockSpec((1, C_out_pad), lambda i: (0, 0)),
            ],
            out_specs=pl.BlockSpec((tm_eff, C_out_pad), lambda i: (i, 0)),
        ),
        compiler_params=pltpu.CompilerParams(
            dimension_semantics=("parallel",),
            vmem_limit_bytes=48 * 1024 * 1024,
        ),
        cost_estimate=cost,
    )(x2d, w_p, b2d)

    out2d = out2d[:M, :C_out]
    # Dropout: nn.Dropout is an identity in eval / inference mode.
    # TODO(synk): training-mode dropout (pltpu.prng_* mask + scale) not implemented.
    return out2d.reshape(B, H, W, C_out)


if __name__ == "__main__":
    # Small config consistent with DinatOutput: dim=32, mlp_ratio=4.0
    dim = 32
    mlp_ratio = 4.0
    in_features = int(mlp_ratio * dim)  # 128

    B, H, W = 2, 8, 8

    key = jax.random.PRNGKey(0)
    kx, kw, kb = jax.random.split(key, 3)

    hidden_states = jax.random.normal(kx, (B, H, W, in_features), dtype=jnp.float32)

    # Deterministic parameter init mimicking nn.Linear's uniform(-1/sqrt(fan_in), ...)
    bound = 1.0 / (in_features ** 0.5)
    weight = jax.random.uniform(kw, (dim, in_features), minval=-bound, maxval=bound,
                                dtype=jnp.float32)  # PyTorch layout (out, in)
    bias = jax.random.uniform(kb, (dim,), minval=-bound, maxval=bound,
                              dtype=jnp.float32)
    w_t = weight.T  # (in_features, dim) for x @ W^T

    out = dinat_output_forward(hidden_states, w_t, bias)
    out = jax.block_until_ready(out)
    assert out.shape == (B, H, W, dim)
    assert out.dtype == hidden_states.dtype

    # Sanity check: bf16 matmul with f32 accumulation, same as the kernel.
    ref = jnp.dot(hidden_states.reshape(-1, in_features).astype(jnp.bfloat16),
                  w_t.astype(jnp.bfloat16),
                  preferred_element_type=jnp.float32) + bias
    ref = ref.astype(hidden_states.dtype).reshape(B, H, W, dim)
    assert jnp.allclose(out, ref, atol=2e-2, rtol=2e-2)

    # Also loosely check against the full-f32 math to guard against gross errors.
    ref32 = (hidden_states.reshape(-1, in_features) @ w_t + bias).reshape(B, H, W, dim)
    assert jnp.allclose(out, ref32, atol=5e-2, rtol=5e-2)

    print("KERNEL_OK")
</pallas_src>

<mosaic_0001>
module attributes {stable_mosaic.version = 11 : i64} {
  func.func @_dense_bias_kernel(%arg0: i32, %arg1: memref<256x128xbf16, #tpu.memory_space<vmem>>, %arg2: memref<128x128xbf16, #tpu.memory_space<vmem>>, %arg3: memref<1x128xf32, #tpu.memory_space<vmem>>, %arg4: memref<256x128xf32, #tpu.memory_space<vmem>>) attributes {dimension_semantics = [#tpu.dimension_semantics<parallel>], iteration_bounds = array<i64: 1>, scalar_prefetch = 0 : i64, scratch_operands = 0 : i64, tpu.core_type = #tpu.core_type<tc>, window_params = [{transform_indices = @transform_0, window_bounds = array<i64: 256, 128>}, {pipeline_mode = #tpu.pipeline_mode<synchronous>, transform_indices = @transform_1, window_bounds = array<i64: 128, 128>}, {pipeline_mode = #tpu.pipeline_mode<synchronous>, transform_indices = @transform_2, window_bounds = array<i64: 1, 128>}, {transform_indices = @transform_3, window_bounds = array<i64: 256, 128>}]} {
    %c0 = arith.constant 0 : index
    %c0_0 = arith.constant 0 : index
    %0 = vector.load %arg1[%c0, %c0_0] : memref<256x128xbf16, #tpu.memory_space<vmem>>, vector<256x128xbf16>
    %c0_1 = arith.constant 0 : index
    %c0_2 = arith.constant 0 : index
    %1 = vector.load %arg2[%c0_1, %c0_2] : memref<128x128xbf16, #tpu.memory_space<vmem>>, vector<128x128xbf16>
    %cst = arith.constant dense<0.000000e+00> : vector<256x128xf32>
    %2 = tpu.matmul %0, %1, %cst {dimension_numbers = #tpu.dot_dimension_numbers<[1], [0], [0], [1], [0, 0, 1, 1], [], []>} : vector<256x128xbf16>, vector<128x128xbf16>, vector<256x128xf32> -> vector<256x128xf32>
    %c0_3 = arith.constant 0 : index
    %c0_4 = arith.constant 0 : index
    %3 = vector.load %arg3[%c0_3, %c0_4] : memref<1x128xf32, #tpu.memory_space<vmem>>, vector<1x128xf32>
    %4 = vector.broadcast %3 : vector<1x128xf32> to vector<256x128xf32>
    %5 = arith.addf %2, %4 : vector<256x128xf32>
    %c0_5 = arith.constant 0 : index
    %c0_6 = arith.constant 0 : index
    %6 = vector.load %arg4[%c0_5, %c0_6] : memref<256x128xf32, #tpu.memory_space<vmem>>, vector<256x128xf32>
    tpu.vector_store %arg4[%c0_5, %c0_6], %5 {strides = array<i32>} : memref<256x128xf32, #tpu.memory_space<vmem>>, vector<256x128xf32>,
    return
  }
  func.func @transform_0(%arg0: i32) -> (i32, i32) {
    %c0_i32 = arith.constant 0 : i32
    %c0_i32_0 = arith.constant 0 : i32
    return %arg0, %c0_i32 : i32, i32
  }
  func.func @transform_1(%arg0: i32) -> (i32, i32) {
    %c0_i32 = arith.constant 0 : i32
    %c0_i32_0 = arith.constant 0 : i32
    %c0_i32_1 = arith.constant 0 : i32
    return %c0_i32, %c0_i32_0 : i32, i32
  }
  func.func @transform_2(%arg0: i32) -> (i32, i32) {
    %c0_i32 = arith.constant 0 : i32
    %c0_i32_0 = arith.constant 0 : i32
    %c0_i32_1 = arith.constant 0 : i32
    return %c0_i32, %c0_i32_0 : i32, i32
  }
  func.func @transform_3(%arg0: i32) -> (i32, i32) {
    %c0_i32 = arith.constant 0 : i32
    %c0_i32_0 = arith.constant 0 : i32
    return %arg0, %c0_i32 : i32, i32
  }
}

</mosaic_0001>

<llo_original>
// kernel: dinat_output_forward.1
$region0: #{dinat_output_forward.1}
  #allocation0 [shape = 'u32[]', space=smem, size = 0x4, offset = 0x4, fixed_abs, tag = 'smem constant byte address 0x4 - core index']
  #allocation1 [shape = 'u32[72,128]{1,0:T(1,128)}', space=vmem, size = 0x9000, scoped, tag = 'internal scratch']
  %s0 = inlined_call_operand.vmem [shape: bf16[256,128], index: 0, kind: input, shape index: {}]
  %s1 = inlined_call_operand.vmem [shape: bf16[128,128], index: 1, kind: input, shape index: {}]
  %s2 = inlined_call_operand.vmem [shape: f32[1,128], index: 2, kind: input, shape index: {}]
  %s3 = inlined_call_operand.vmem [shape: f32[256,128], index: 3, kind: output, shape index: {}]
  %s4 = sld [smem:[#allocation0]]
  $region22: #{dinat_output_forward.1} parent=0
    _
  %s6 = ssub.s32 1, %s4
  %s7 = scalar_select 0, %s6, %s4
  // Predicated region
  $region2: #{dinat_output_forward.1} parent=0 // pred_check
    _
  $region3: #{dinat_output_forward.1} parent=0 // pred_check_branch
    %9 = sbr.rel (0) target = $region5
  $region4: #{dinat_output_forward.1} parent=0 // pred_region
    _
  $region5: #{dinat_output_forward.1} parent=0 // pred_fallthru
    _
  // Predicated region
  $region6: #{dinat_output_forward.1} parent=0 // pred_check
    _
  $region7: #{dinat_output_forward.1} parent=0 // pred_check_branch
    %11 = sbr.rel (0) target = $region9
  $region8: #{dinat_output_forward.1} parent=0 // pred_region
    _
  $region9: #{dinat_output_forward.1} parent=0 // pred_fallthru
    _
  // Predicated region
  $region10: #{dinat_output_forward.1} parent=0 // pred_check
    _
  $region11: #{dinat_output_forward.1} parent=0 // pred_check_branch
    %13 = sbr.rel (0) target = $region13
  $region12: #{dinat_output_forward.1} parent=0 // pred_region
    _
  $region13: #{dinat_output_forward.1} parent=0 // pred_fallthru
    _
  %v14 = vld [vmem:[%s0] sm:$0xf]
  %v15 = vld [vmem:[%s0 + $0x4] sm:$0xf]
  %v16 = vld [vmem:[%s0 + $0x8] sm:$0xf]
  %v17 = vld [vmem:[%s0 + $0xc] sm:$0xf]
  %v18 = vld [vmem:[%s0 + $0x10] sm:$0xf]
  %v19 = vld [vmem:[%s0 + $0x14] sm:$0xf]
  %v20 = vld [vmem:[%s0 + $0x18] sm:$0xf]
  %v21 = vld [vmem:[%s0 + $0x1c] sm:$0xf]
  %v22 = vld [vmem:[%s0 + $0x20] sm:$0xf]
  %v23 = vld [vmem:[%s0 + $0x24] sm:$0xf]
  %v24 = vld [vmem:[%s0 + $0x28] sm:$0xf]
  %v25 = vld [vmem:[%s0 + $0x2c] sm:$0xf]
  %v26 = vld [vmem:[%s0 + $0x30] sm:$0xf]
  %v27 = vld [vmem:[%s0 + $0x34] sm:$0xf]
  %v28 = vld [vmem:[%s0 + $0x38] sm:$0xf]
  %v29 = vld [vmem:[%s0 + $0x3c] sm:$0xf]
  %v30 = vld [vmem:[%s0 + $0x40] sm:$0xf]
  %v31 = vld [vmem:[%s0 + $0x44] sm:$0xf]
  %v32 = vld [vmem:[%s0 + $0x48] sm:$0xf]
  %v33 = vld [vmem:[%s0 + $0x4c] sm:$0xf]
  %v34 = vld [vmem:[%s0 + $0x50] sm:$0xf]
  %v35 = vld [vmem:[%s0 + $0x54] sm:$0xf]
  %v36 = vld [vmem:[%s0 + $0x58] sm:$0xf]
  %v37 = vld [vmem:[%s0 + $0x5c] sm:$0xf]
  %v38 = vld [vmem:[%s0 + $0x60] sm:$0xf]
  %v39 = vld [vmem:[%s0 + $0x64] sm:$0xf]
  %v40 = vld [vmem:[%s0 + $0x68] sm:$0xf]
  %v41 = vld [vmem:[%s0 + $0x6c] sm:$0xf]
  %v42 = vld [vmem:[%s0 + $0x70] sm:$0xf]
  %v43 = vld [vmem:[%s0 + $0x74] sm:$0xf]
  %v44 = vld [vmem:[%s0 + $0x78] sm:$0xf]
  %v45 = vld [vmem:[%s0 + $0x7c] sm:$0xf]
  %v46 = vld [vmem:[%s1] sm:$0xf]
  %v47 = vld [vmem:[%s1 + $0x4] sm:$0xf]
  %v48 = vld [vmem:[%s1 + $0x8] sm:$0xf]
  %v49 = vld [vmem:[%s1 + $0xc] sm:$0xf]
  %v50 = vld [vmem:[%s1 + $0x10] sm:$0xf]
  %v51 = vld [vmem:[%s1 + $0x14] sm:$0xf]
  %v52 = vld [vmem:[%s1 + $0x18] sm:$0xf]
  %v53 = vld [vmem:[%s1 + $0x1c] sm:$0xf]
  %v54 = vld [vmem:[%s1 + $0x20] sm:$0xf]
  %v55 = vld [vmem:[%s1 + $0x24] sm:$0xf]
  %v56 = vld [vmem:[%s1 + $0x28] sm:$0xf]
  %v57 = vld [vmem:[%s1 + $0x2c] sm:$0xf]
  %v58 = vld [vmem:[%s1 + $0x30] sm:$0xf]
  %v59 = vld [vmem:[%s1 + $0x34] sm:$0xf]
  %v60 = vld [vmem:[%s1 + $0x38] sm:$0xf]
  %v61 = vld [vmem:[%s1 + $0x3c] sm:$0xf]
  %v62 = vld [vmem:[%s2] sm:$0x1]
  %v64 = vperm.slane %v62, 0
  %v98 = vunpack.c.l.b16 %v14
  %v99 = vunpack.c.l.b16 %v15
  %v100 = vunpack.c.l.b16 %v16
  %v101 = vunpack.c.l.b16 %v17
  %v102 = vunpack.c.l.b16 %v18
  %v103 = vunpack.c.l.b16 %v19
  %v104 = vunpack.c.l.b16 %v20
  %v105 = vunpack.c.l.b16 %v21
  %v106 = vunpack.c.l.b16 %v22
  %v107 = vunpack.c.l.b16 %v23
  %v108 = vunpack.c.l.b16 %v24
  %v109 = vunpack.c.l.b16 %v25
  %v110 = vunpack.c.l.b16 %v26
  %v111 = vunpack.c.l.b16 %v27
  %v112 = vunpack.c.l.b16 %v28
  %v113 = vunpack.c.l.b16 %v29
  %v114 = vunpack.c.l.b16 %v30
  %v115 = vunpack.c.l.b16 %v31
  %v116 = vunpack.c.l.b16 %v32
  %v117 = vunpack.c.l.b16 %v33
  %v118 = vunpack.c.l.b16 %v34
  %v119 = vunpack.c.l.b16 %v35
  %v120 = vunpack.c.l.b16 %v36
  %v121 = vunpack.c.l.b16 %v37
  %v122 = vunpack.c.l.b16 %v38
  %v123 = vunpack.c.l.b16 %v39
  %v124 = vunpack.c.l.b16 %v40
  %v125 = vunpack.c.l.b16 %v41
  %v126 = vunpack.c.l.b16 %v42
  %v127 = vunpack.c.l.b16 %v43
  %v128 = vunpack.c.l.b16 %v44
  %v129 = vunpack.c.l.b16 %v45
  %v130 = vpack.c.b16 %v99, %v98
  %v131 = vpack.c.b16 %v101, %v100
  %v132 = vpack.c.b16 %v103, %v102
  %v133 = vpack.c.b16 %v105, %v104
  %v134 = vpack.c.b16 %v107, %v106
  %v135 = vpack.c.b16 %v109, %v108
  %v136 = vpack.c.b16 %v111, %v110
  %v137 = vpack.c.b16 %v113, %v112
  %v138 = vpack.c.b16 %v115, %v114
  %v139 = vpack.c.b16 %v117, %v116
  %v140 = vpack.c.b16 %v119, %v118
  %v141 = vpack.c.b16 %v121, %v120
  %v142 = vpack.c.b16 %v123, %v122
  %v143 = vpack.c.b16 %v125, %v124
  %v144 = vpack.c.b16 %v127, %v126
  %v145 = vpack.c.b16 %v129, %v128
  %v178 = vunpack.c.l.b16 %v46
  %v179 = vunpack.c.l.b16 %v47
  %v180 = vunpack.c.l.b16 %v48
  %v181 = vunpack.c.l.b16 %v49
  %v182 = vunpack.c.l.b16 %v50
  %v183 = vunpack.c.l.b16 %v51
  %v184 = vunpack.c.l.b16 %v52
  %v185 = vunpack.c.l.b16 %v53
  %v186 = vunpack.c.l.b16 %v54
  %v187 = vunpack.c.l.b16 %v55
  %v188 = vunpack.c.l.b16 %v56
  %v189 = vunpack.c.l.b16 %v57
  %v190 = vunpack.c.l.b16 %v58
  %v191 = vunpack.c.l.b16 %v59
  %v192 = vunpack.c.l.b16 %v60
  %v193 = vunpack.c.l.b16 %v61
  %v194 = vpack.c.b16 %v179, %v178
  %v195 = vpack.c.b16 %v181, %v180
  %v196 = vpack.c.b16 %v183, %v182
  %v197 = vpack.c.b16 %v185, %v184
  %v198 = vpack.c.b16 %v187, %v186
  %v199 = vpack.c.b16 %v189, %v188
  %v200 = vpack.c.b16 %v191, %v190
  %v201 = vpack.c.b16 %v193, %v192
  %210 = vmatpush.bf16.msra.mxu0 %v201
  %211 = vmatpush.bf16.msra.mxu0 %v200
  %212 = vmatpush.bf16.msra.mxu0 %v199
  %213 = vmatpush.bf16.msra.mxu0 %v198
  %214 = vmatpush.bf16.msra.mxu0 %v197
  %215 = vmatpush.bf16.msra.mxu0 %v196
  %216 = vmatpush.bf16.msra.mxu0 %v195
  %217 = vmatpush.bf16.msra.mxu0 %v194
  %218 = vmatmul.bf16.gmra.mxu0 %v130
  %v219 = vpop.f32.mrf.mxu0
  %v220 = vadd.f32 %v64, %v219
  %v221 = vpop.f32.mrf.mxu0
  %v222 = vadd.f32 %v64, %v221
  %223 = vmatmul.bf16.gmra.mxu0 %v131
  %v224 = vpop.f32.mrf.mxu0
  %v225 = vadd.f32 %v64, %v224
  %v226 = vpop.f32.mrf.mxu0
  %v227 = vadd.f32 %v64, %v226
  %228 = vmatmul.bf16.gmra.mxu0 %v132
  %v229 = vpop.f32.mrf.mxu0
  %v230 = vadd.f32 %v64, %v229
  %v231 = vpop.f32.mrf.mxu0
  %v232 = vadd.f32 %v64, %v231
  %233 = vmatmul.bf16.gmra.mxu0 %v133
  %v234 = vpop.f32.mrf.mxu0
  %v235 = vadd.f32 %v64, %v234
  %v236 = vpop.f32.mrf.mxu0
  %v237 = vadd.f32 %v64, %v236
  %238 = vmatmul.bf16.gmra.mxu0 %v134
  %v239 = vpop.f32.mrf.mxu0
  %v240 = vadd.f32 %v64, %v239
  %v241 = vpop.f32.mrf.mxu0
  %v242 = vadd.f32 %v64, %v241
  %243 = vmatmul.bf16.gmra.mxu0 %v135
  %v244 = vpop.f32.mrf.mxu0
  %v245 = vadd.f32 %v64, %v244
  %v246 = vpop.f32.mrf.mxu0
  %v247 = vadd.f32 %v64, %v246
  %248 = vmatmul.bf16.gmra.mxu0 %v136
  %v249 = vpop.f32.mrf.mxu0
  %v250 = vadd.f32 %v64, %v249
  %v251 = vpop.f32.mrf.mxu0
  %v252 = vadd.f32 %v64, %v251
  %253 = vmatmul.bf16.gmra.mxu0 %v137
  %v254 = vpop.f32.mrf.mxu0
  %v255 = vadd.f32 %v64, %v254
  %v256 = vpop.f32.mrf.mxu0
  %v257 = vadd.f32 %v64, %v256
  %258 = vmatmul.bf16.gmra.mxu0 %v138
  %v259 = vpop.f32.mrf.mxu0
  %v260 = vadd.f32 %v64, %v259
  %v261 = vpop.f32.mrf.mxu0
  %v262 = vadd.f32 %v64, %v261
  %263 = vmatmul.bf16.gmra.mxu0 %v139
  %v264 = vpop.f32.mrf.mxu0
  %v265 = vadd.f32 %v64, %v264
  %v266 = vpop.f32.mrf.mxu0
  %v267 = vadd.f32 %v64, %v266
  %268 = vmatmul.bf16.gmra.mxu0 %v140
  %v269 = vpop.f32.mrf.mxu0
  %v270 = vadd.f32 %v64, %v269
  %v271 = vpop.f32.mrf.mxu0
  %v272 = vadd.f32 %v64, %v271
  %273 = vmatmul.bf16.gmra.mxu0 %v141
  %v274 = vpop.f32.mrf.mxu0
  %v275 = vadd.f32 %v64, %v274
  %v276 = vpop.f32.mrf.mxu0
  %v277 = vadd.f32 %v64, %v276
  %278 = vmatmul.bf16.gmra.mxu0 %v142
  %v279 = vpop.f32.mrf.mxu0
  %v280 = vadd.f32 %v64, %v279
  %v281 = vpop.f32.mrf.mxu0
  %v282 = vadd.f32 %v64, %v281
  %283 = vmatmul.bf16.gmra.mxu0 %v143
  %v284 = vpop.f32.mrf.mxu0
  %v285 = vadd.f32 %v64, %v284
  %v286 = vpop.f32.mrf.mxu0
  %v287 = vadd.f32 %v64, %v286
  %288 = vmatmul.bf16.gmra.mxu0 %v144
  %v289 = vpop.f32.mrf.mxu0
  %v290 = vadd.f32 %v64, %v289
  %v291 = vpop.f32.mrf.mxu0
  %v292 = vadd.f32 %v64, %v291
  %293 = vmatmul.bf16.gmra.mxu0 %v145
  %v294 = vpop.f32.mrf.mxu0
  %v295 = vadd.f32 %v64, %v294
  %v296 = vpop.f32.mrf.mxu0
  %v297 = vadd.f32 %v64, %v296
  %298 = vdwg.mxu0
  %299 = vst [vmem:[%s3] sm:$0xff] %v220
  %300 = vst [vmem:[%s3 + $0x8] sm:$0xff] %v222
  %301 = vst [vmem:[%s3 + $0x10] sm:$0xff] %v225
  %302 = vst [vmem:[%s3 + $0x18] sm:$0xff] %v227
  %303 = vst [vmem:[%s3 + $0x20] sm:$0xff] %v230
  %304 = vst [vmem:[%s3 + $0x28] sm:$0xff] %v232
  %305 = vst [vmem:[%s3 + $0x30] sm:$0xff] %v235
  %306 = vst [vmem:[%s3 + $0x38] sm:$0xff] %v237
  %307 = vst [vmem:[%s3 + $0x40] sm:$0xff] %v240
  %308 = vst [vmem:[%s3 + $0x48] sm:$0xff] %v242
  %309 = vst [vmem:[%s3 + $0x50] sm:$0xff] %v245
  %310 = vst [vmem:[%s3 + $0x58] sm:$0xff] %v247
  %311 = vst [vmem:[%s3 + $0x60] sm:$0xff] %v250
  %312 = vst [vmem:[%s3 + $0x68] sm:$0xff] %v252
  %313 = vst [vmem:[%s3 + $0x70] sm:$0xff] %v255
  %314 = vst [vmem:[%s3 + $0x78] sm:$0xff] %v257
  %315 = vst [vmem:[%s3 + $0x80] sm:$0xff] %v260
  %316 = vst [vmem:[%s3 + $0x88] sm:$0xff] %v262
  %317 = vst [vmem:[%s3 + $0x90] sm:$0xff] %v265
  %318 = vst [vmem:[%s3 + $0x98] sm:$0xff] %v267
  %319 = vst [vmem:[%s3 + $0xa0] sm:$0xff] %v270
  %320 = vst [vmem:[%s3 + $0xa8] sm:$0xff] %v272
  %321 = vst [vmem:[%s3 + $0xb0] sm:$0xff] %v275
  %322 = vst [vmem:[%s3 + $0xb8] sm:$0xff] %v277
  %323 = vst [vmem:[%s3 + $0xc0] sm:$0xff] %v280
  %324 = vst [vmem:[%s3 + $0xc8] sm:$0xff] %v282
  %325 = vst [vmem:[%s3 + $0xd0] sm:$0xff] %v285
  %326 = vst [vmem:[%s3 + $0xd8] sm:$0xff] %v287
  %327 = vst [vmem:[%s3 + $0xe0] sm:$0xff] %v290
  %328 = vst [vmem:[%s3 + $0xe8] sm:$0xff] %v292
  %329 = vst [vmem:[%s3 + $0xf0] sm:$0xff] %v295
  %330 = vst [vmem:[%s3 + $0xf8] sm:$0xff] %v297
  // Predicated region
  $region14: #{dinat_output_forward.1} parent=0 // pred_check
    _
  $region15: #{dinat_output_forward.1} parent=0 // pred_check_branch
    %332 = sbr.rel (0) target = $region17
  $region16: #{dinat_output_forward.1} parent=0 // pred_region
    _
  $region17: #{dinat_output_forward.1} parent=0 // pred_fallthru
    _
  // Predicated region
  $region18: #{dinat_output_forward.1} parent=0 // pred_check
    _
  $region19: #{dinat_output_forward.1} parent=0 // pred_check_branch
    %334 = sbr.rel (0) target = $region21
  $region20: #{dinat_output_forward.1} parent=0 // pred_region
    _
  $region21: #{dinat_output_forward.1} parent=0 // pred_fallthru
    _

</llo_original>
